<compile_context>
chip_gen: v7x
topology: tpu7x:2x2x1
jax: 0.10.0
libtpu: 0.0.40
codegen_flags: <defaults>
</compile_context>

<pallas_src>
import functools

import jax
import jax.numpy as jnp
from jax.experimental import pallas as pl
from jax.experimental.pallas import tpu as pltpu


def _make_center_block_kernel(nb, H, WC):
    """Builds the kernel for one grid step of nb images.

    x_ref  : (nb*H, WC)     bf16  lane-dense input rows (w-major, c-minor)
    wb_ref : (3*WC, WCt)    bf16  per-kh banded weights stacked along K
    b_ref  : (1, WCt)       f32   bias tiled across W
    o_ref  : (nb*H, WCt)    out   lane-dense output rows
    lhs_ref: (nb*H, 3*WC)   bf16  scratch: three row-shifted copies of x
    """

    def kernel(x_ref, wb_ref, b_ref, o_ref, lhs_ref):
        zero_row = jnp.zeros((1, WC), dtype=lhs_ref.dtype)
        for n in range(nb):  # static unroll (nb is small)
            r0 = n * H
            # kh = 1 (center tap): aligned copy.
            lhs_ref[r0:r0 + H, WC:2 * WC] = x_ref[r0:r0 + H, :]
            # kh = 0 (top tap): output row h reads input row h-1.
            lhs_ref[r0:r0 + 1, 0:WC] = zero_row                    # top pad
            lhs_ref[r0 + 1:r0 + H, 0:WC] = x_ref[r0:r0 + H - 1, :]
            # kh = 2 (bottom tap): output row h reads input row h+1.
            lhs_ref[r0:r0 + H - 1, 2 * WC:3 * WC] = x_ref[r0 + 1:r0 + H, :]
            lhs_ref[r0 + H - 1:r0 + H, 2 * WC:3 * WC] = zero_row   # bottom pad

        # Single MXU push: M = nb*H, K = 3*WC, N = WCt; f32 accumulation.
        acc = jnp.dot(lhs_ref[...], wb_ref[...],
                      preferred_element_type=jnp.float32)
        # Bias + one contiguous lane-dense store (both branches at once).
        o_ref[...] = (acc + b_ref[...]).astype(o_ref.dtype)

    return kernel


def _banded_weights(w_hwio, W, dtype):
    """Fold the kw taps (and width zero-padding) of a 3x3/pad=1 conv into a
    stacked banded matrix mapping (3*W*Cin,) LHS rows to (W*Ctot,) output
    rows. Row blocks are ordered kh = 0, 1, 2 to match the kernel's LHS."""
    KH, KW, Cin, Ctot = w_hwio.shape
    mats = []
    for kh in range(KH):
        b = jnp.zeros((W * Cin, W * Ctot), jnp.float32)
        for kw in range(KW):
            # e[v, w] = 1 iff v == w + kw - 1; out-of-range columns stay zero,
            # which implements the width zero-padding by omission.
            e = jnp.eye(W, k=1 - kw, dtype=jnp.float32)
            b += jnp.einsum("vw,ic->viwc", e,
                            w_hwio[kh, kw].astype(jnp.float32)
                            ).reshape(W * Cin, W * Ctot)
        mats.append(b)
    return jnp.concatenate(mats, axis=0).astype(dtype)   # (3*W*Cin, W*Ctot)


@functools.partial(jax.jit, static_argnames=("out_dtype",))
def center_block(x_nchw, w1, b1, w2, b2, out_dtype=jnp.bfloat16):
    """x_nchw: (N, Cin, H, W) f32; w*: (Cb, Cin, 3, 3) OIHW; b*: (Cb,).
    Returns (N, 2*Cb, H, W) out_dtype == torch.cat([conv1(x), conv2(x)], 1)."""
    N, Cin, H, W = x_nchw.shape
    Cb = w1.shape[0]
    Ctot = 2 * Cb
    # Hard-coded 3x3 / padding=1 / stride=1 assumptions.
    assert w1.shape == (Cb, Cin, 3, 3) and w2.shape == (Cb, Cin, 3, 3)
    assert H >= 2
    WC, WCt = W * Cin, W * Ctot

    compute_dtype = jnp.bfloat16  # bf16 operands, f32 MXU accumulation

    # --- weight / bias prep (tiny, once per call) --------------------------
    w_merged = jnp.concatenate([w1, w2], axis=0)        # (Ctot, Cin, 3, 3)
    b_merged = jnp.concatenate([b1, b2], axis=0)        # (Ctot,)
    w_hwio = jnp.transpose(w_merged, (2, 3, 1, 0))      # (3, 3, Cin, Ctot)
    wbcat = _banded_weights(w_hwio, W, compute_dtype)   # (3*WC, WCt)
    bias_dense = jnp.tile(b_merged, W).reshape(1, WCt).astype(jnp.float32)

    # --- input layout: NCHW -> lane-dense rows (N*H, W*Cin) ----------------
    x_dense = jnp.transpose(x_nchw, (0, 2, 3, 1)).reshape(N * H, WC)
    x_dense = x_dense.astype(compute_dtype)

    # --- batch nb images per grid step so M = nb*H approaches the MXU row
    #     depth (256 on v6e/v7x, 128 on v5e). -------------------------------
    nb = min(N, max(1, 256 // H))
    G = -(-N // nb)                      # grid steps
    N_pad = G * nb
    if N_pad != N:
        x_dense = jnp.pad(x_dense, ((0, (N_pad - N) * H), (0, 0)))
    # NOTE(v7x): prefer batch sizes where G >= 2 so both TensorCores get
    # "parallel" grid steps; at tiny N the larger-M choice wins here.

    flops = 2 * N * H * W * 3 * 3 * Cin * Ctot           # true conv FLOPs
    bytes_accessed = (N_pad * H * WC * 2                  # x (bf16)
                      + 3 * WC * WCt * 2                  # banded weights
                      + WCt * 4                           # bias (f32)
                      + N_pad * H * WCt * jnp.dtype(out_dtype).itemsize)

    out_dense = pl.pallas_call(
        _make_center_block_kernel(nb, H, WC),
        out_shape=jax.ShapeDtypeStruct((N_pad * H, WCt), out_dtype),
        grid_spec=pltpu.PrefetchScalarGridSpec(
            num_scalar_prefetch=0,
            grid=(G,),
            in_specs=[
                pl.BlockSpec((nb * H, WC), lambda g: (g, 0)),
                # Constant index_map -> not re-DMA'd across steps.
                # TODO(synk): at production W, pin with pipeline_mode=
                # pl.Buffered(1) or a persistent VMEM scratch to halve its
                # VMEM footprint (matters on v7x's 64 MiB VMEM).
                pl.BlockSpec((3 * WC, WCt), lambda g: (0, 0)),
                pl.BlockSpec((1, WCt), lambda g: (0, 0)),
            ],
            out_specs=pl.BlockSpec((nb * H, WCt), lambda g: (g, 0)),
            scratch_shapes=[pltpu.VMEM((nb * H, 3 * WC), compute_dtype)],
        ),
        compiler_params=pltpu.CompilerParams(
            dimension_semantics=("parallel",),
            vmem_limit_bytes=32 * 1024 * 1024),
        cost_estimate=pl.CostEstimate(
            flops=flops, transcendentals=0, bytes_accessed=bytes_accessed),
    )(x_dense, wbcat, bias_dense)

    # Lane-dense rows -> NCHW (for parity with the PyTorch module only).
    out_dense = out_dense[:N * H]
    return jnp.transpose(out_dense.reshape(N, H, W, Ctot), (0, 3, 1, 2))


def _reference(x_nchw, w1, b1, w2, b2):
    def conv(x, w, b):
        y = jax.lax.conv_general_dilated(
            x, w, window_strides=(1, 1), padding=((1, 1), (1, 1)),
            dimension_numbers=("NCHW", "OIHW", "NCHW"))
        return y + b[None, :, None, None]
    return jnp.concatenate([conv(x_nchw, w1, b1), conv(x_nchw, w2, b2)], axis=1)


if __name__ == "__main__":
    N, Cin, H, W = 2, 4, 16, 16
    Cb = 4  # output channels per branch

    key = jax.random.PRNGKey(0)
    kx, kw1, kb1, kw2, kb2 = jax.random.split(key, 5)
    x = jax.random.normal(kx, (N, Cin, H, W), dtype=jnp.float32)
    w1 = jax.random.normal(kw1, (Cb, Cin, 3, 3), dtype=jnp.float32) * 0.1
    b1 = jax.random.normal(kb1, (Cb,), dtype=jnp.float32) * 0.1
    w2 = jax.random.normal(kw2, (Cb, Cin, 3, 3), dtype=jnp.float32) * 0.1
    b2 = jax.random.normal(kb2, (Cb,), dtype=jnp.float32) * 0.1

    out = center_block(x, w1, b1, w2, b2)
    out = jax.block_until_ready(out)

    ref = _reference(x, w1, b1, w2, b2)
    assert out.shape == (N, 2 * Cb, H, W)
    # bf16 operands + bf16 output (f32 accumulation) -> relaxed tolerance.
    out_f32 = out.astype(jnp.float32)
    max_err = float(jnp.max(jnp.abs(out_f32 - ref)))
    assert jnp.allclose(out_f32, ref, atol=5e-2, rtol=5e-2), max_err
    print("KERNEL_OK")
</pallas_src>

<mosaic_0001>
module attributes {stable_mosaic.version = 11 : i64} {
  func.func @kernel(%arg0: i32, %arg1: memref<32x64xbf16, #tpu.memory_space<vmem>>, %arg2: memref<192x128xbf16, #tpu.memory_space<vmem>>, %arg3: memref<1x128xf32, #tpu.memory_space<vmem>>, %arg4: memref<32x128xbf16, #tpu.memory_space<vmem>>, %arg5: memref<32x192xbf16, #tpu.memory_space<vmem>>) attributes {dimension_semantics = [#tpu.dimension_semantics<parallel>], iteration_bounds = array<i64: 1>, scalar_prefetch = 0 : i64, scratch_operands = 1 : i64, tpu.core_type = #tpu.core_type<tc>, window_params = [{transform_indices = @transform_0, window_bounds = array<i64: 32, 64>}, {pipeline_mode = #tpu.pipeline_mode<synchronous>, transform_indices = @transform_1, window_bounds = array<i64: 192, 128>}, {pipeline_mode = #tpu.pipeline_mode<synchronous>, transform_indices = @transform_2, window_bounds = array<i64: 1, 128>}, {transform_indices = @transform_3, window_bounds = array<i64: 32, 128>}]} {
    %cst = arith.constant 0.000000e+00 : bf16
    %0 = vector.broadcast %cst : bf16 to vector<1x64xbf16>
    %c0 = arith.constant 0 : index
    %c0_0 = arith.constant 0 : index
    %1 = vector.load %arg1[%c0, %c0_0] : memref<32x64xbf16, #tpu.memory_space<vmem>>, vector<16x64xbf16>
    %c0_1 = arith.constant 0 : index
    %c64 = arith.constant 64 : index
    %2 = vector.load %arg5[%c0_1, %c64] : memref<32x192xbf16, #tpu.memory_space<vmem>>, vector<16x64xbf16>
    tpu.vector_store %arg5[%c0_1, %c64], %1 {strides = array<i32>} : memref<32x192xbf16, #tpu.memory_space<vmem>>, vector<16x64xbf16>,
    %c0_2 = arith.constant 0 : index
    %c0_3 = arith.constant 0 : index
    %3 = vector.load %arg5[%c0_2, %c0_3] : memref<32x192xbf16, #tpu.memory_space<vmem>>, vector<1x64xbf16>
    tpu.vector_store %arg5[%c0_2, %c0_3], %0 {strides = array<i32>} : memref<32x192xbf16, #tpu.memory_space<vmem>>, vector<1x64xbf16>,
    %c0_4 = arith.constant 0 : index
    %c0_5 = arith.constant 0 : index
    %4 = vector.load %arg1[%c0_4, %c0_5] : memref<32x64xbf16, #tpu.memory_space<vmem>>, vector<15x64xbf16>
    %c1 = arith.constant 1 : index
    %c0_6 = arith.constant 0 : index
    %5 = vector.load %arg5[%c1, %c0_6] : memref<32x192xbf16, #tpu.memory_space<vmem>>, vector<15x64xbf16>
    tpu.vector_store %arg5[%c1, %c0_6], %4 {strides = array<i32>} : memref<32x192xbf16, #tpu.memory_space<vmem>>, vector<15x64xbf16>,
    %c1_7 = arith.constant 1 : index
    %c0_8 = arith.constant 0 : index
    %6 = vector.load %arg1[%c1_7, %c0_8] : memref<32x64xbf16, #tpu.memory_space<vmem>>, vector<15x64xbf16>
    %c0_9 = arith.constant 0 : index
    %c128 = arith.constant 128 : index
    %7 = vector.load %arg5[%c0_9, %c128] : memref<32x192xbf16, #tpu.memory_space<vmem>>, vector<15x64xbf16>
    tpu.vector_store %arg5[%c0_9, %c128], %6 {strides = array<i32>} : memref<32x192xbf16, #tpu.memory_space<vmem>>, vector<15x64xbf16>,
    %c15 = arith.constant 15 : index
    %c128_10 = arith.constant 128 : index
    %8 = vector.load %arg5[%c15, %c128_10] : memref<32x192xbf16, #tpu.memory_space<vmem>>, vector<1x64xbf16>
    tpu.vector_store %arg5[%c15, %c128_10], %0 {strides = array<i32>} : memref<32x192xbf16, #tpu.memory_space<vmem>>, vector<1x64xbf16>,
    %c16 = arith.constant 16 : index
    %c0_11 = arith.constant 0 : index
    %9 = vector.load %arg1[%c16, %c0_11] : memref<32x64xbf16, #tpu.memory_space<vmem>>, vector<16x64xbf16>
    %c16_12 = arith.constant 16 : index
    %c64_13 = arith.constant 64 : index
    %10 = vector.load %arg5[%c16_12, %c64_13] : memref<32x192xbf16, #tpu.memory_space<vmem>>, vector<16x64xbf16>
    tpu.vector_store %arg5[%c16_12, %c64_13], %9 {strides = array<i32>} : memref<32x192xbf16, #tpu.memory_space<vmem>>, vector<16x64xbf16>,
    %c16_14 = arith.constant 16 : index
    %c0_15 = arith.constant 0 : index
    %11 = vector.load %arg5[%c16_14, %c0_15] : memref<32x192xbf16, #tpu.memory_space<vmem>>, vector<1x64xbf16>
    tpu.vector_store %arg5[%c16_14, %c0_15], %0 {strides = array<i32>} : memref<32x192xbf16, #tpu.memory_space<vmem>>, vector<1x64xbf16>,
    %c16_16 = arith.constant 16 : index
    %c0_17 = arith.constant 0 : index
    %12 = vector.load %arg1[%c16_16, %c0_17] : memref<32x64xbf16, #tpu.memory_space<vmem>>, vector<15x64xbf16>
    %c17 = arith.constant 17 : index
    %c0_18 = arith.constant 0 : index
    %13 = vector.load %arg5[%c17, %c0_18] : memref<32x192xbf16, #tpu.memory_space<vmem>>, vector<15x64xbf16>
    tpu.vector_store %arg5[%c17, %c0_18], %12 {strides = array<i32>} : memref<32x192xbf16, #tpu.memory_space<vmem>>, vector<15x64xbf16>,
    %c17_19 = arith.constant 17 : index
    %c0_20 = arith.constant 0 : index
    %14 = vector.load %arg1[%c17_19, %c0_20] : memref<32x64xbf16, #tpu.memory_space<vmem>>, vector<15x64xbf16>
    %c16_21 = arith.constant 16 : index
    %c128_22 = arith.constant 128 : index
    %15 = vector.load %arg5[%c16_21, %c128_22] : memref<32x192xbf16, #tpu.memory_space<vmem>>, vector<15x64xbf16>
    tpu.vector_store %arg5[%c16_21, %c128_22], %14 {strides = array<i32>} : memref<32x192xbf16, #tpu.memory_space<vmem>>, vector<15x64xbf16>,
    %c31 = arith.constant 31 : index
    %c128_23 = arith.constant 128 : index
    %16 = vector.load %arg5[%c31, %c128_23] : memref<32x192xbf16, #tpu.memory_space<vmem>>, vector<1x64xbf16>
    tpu.vector_store %arg5[%c31, %c128_23], %0 {strides = array<i32>} : memref<32x192xbf16, #tpu.memory_space<vmem>>, vector<1x64xbf16>,
    %c0_24 = arith.constant 0 : index
    %c0_25 = arith.constant 0 : index
    %17 = vector.load %arg5[%c0_24, %c0_25] : memref<32x192xbf16, #tpu.memory_space<vmem>>, vector<32x192xbf16>
    %c0_26 = arith.constant 0 : index
    %c0_27 = arith.constant 0 : index
    %18 = vector.load %arg2[%c0_26, %c0_27] : memref<192x128xbf16, #tpu.memory_space<vmem>>, vector<192x128xbf16>
    %cst_28 = arith.constant dense<0.000000e+00> : vector<32x128xf32>
    %19 = tpu.matmul %17, %18, %cst_28 {dimension_numbers = #tpu.dot_dimension_numbers<[1], [0], [0], [1], [0, 0, 1, 1], [], []>} : vector<32x192xbf16>, vector<192x128xbf16>, vector<32x128xf32> -> vector<32x128xf32>
    %c0_29 = arith.constant 0 : index
    %c0_30 = arith.constant 0 : index
    %20 = vector.load %arg3[%c0_29, %c0_30] : memref<1x128xf32, #tpu.memory_space<vmem>>, vector<1x128xf32>
    %21 = vector.broadcast %20 : vector<1x128xf32> to vector<32x128xf32>
    %22 = arith.addf %19, %21 : vector<32x128xf32>
    %23 = arith.truncf %22 : vector<32x128xf32> to vector<32x128xbf16>
    %c0_31 = arith.constant 0 : index
    %c0_32 = arith.constant 0 : index
    %24 = vector.load %arg4[%c0_31, %c0_32] : memref<32x128xbf16, #tpu.memory_space<vmem>>, vector<32x128xbf16>
    tpu.vector_store %arg4[%c0_31, %c0_32], %23 {strides = array<i32>} : memref<32x128xbf16, #tpu.memory_space<vmem>>, vector<32x128xbf16>,
    return
  }
  func.func @transform_0(%arg0: i32) -> (i32, i32) {
    %c0_i32 = arith.constant 0 : i32
    %c0_i32_0 = arith.constant 0 : i32
    return %arg0, %c0_i32 : i32, i32
  }
  func.func @transform_1(%arg0: i32) -> (i32, i32) {
    %c0_i32 = arith.constant 0 : i32
    %c0_i32_0 = arith.constant 0 : i32
    %c0_i32_1 = arith.constant 0 : i32
    return %c0_i32, %c0_i32_0 : i32, i32
  }
  func.func @transform_2(%arg0: i32) -> (i32, i32) {
    %c0_i32 = arith.constant 0 : i32
    %c0_i32_0 = arith.constant 0 : i32
    %c0_i32_1 = arith.constant 0 : i32
    return %c0_i32, %c0_i32_0 : i32, i32
  }
  func.func @transform_3(%arg0: i32) -> (i32, i32) {
    %c0_i32 = arith.constant 0 : i32
    %c0_i32_0 = arith.constant 0 : i32
    return %arg0, %c0_i32 : i32, i32
  }
}

</mosaic_0001>

<llo_original>
// kernel: tile.8
$region0: #{tile.8}
  #allocation0 [shape = 's32[1]{0}', space=sflag, size = 0x4, scoped, tag = 'scoped memory for tile.8']
  %s0 = inlined_call_operand.vmem [shape: f32[8], index: 0, kind: input, shape index: {}]
  %s1 = inlined_call_operand.vmem [shape: f32[16,8], index: 1, kind: output, shape index: {}]
  // Predicated region
  $region2: #{tile.8} parent=0 // pred_check
    _
  $region3: #{tile.8} parent=0 // pred_check_branch
    %3 = sbr.rel (0) target = $region5
  $region4: #{tile.8} parent=0 // pred_region
    _
  $region5: #{tile.8} parent=0 // pred_fallthru
    _
  %v4 = vld [vmem:[%s0] ss:$0 sm:$0xff]
  %5 = vst [vmem:[%s1] sm:$0xff] %v4
  %s6 = scalar_lea.vmem %s1, 8
  %7 = vst [vmem:[%s6] sm:$0xff] %v4

// kernel: tile.9
$region0: #{tile.9}
  %s0 = inlined_call_operand.vmem [shape: f32[16,8], index: 0, kind: input, shape index: {}]
  %s1 = inlined_call_operand.vmem [shape: f32[1,128], index: 1, kind: output, shape index: {}]
  $region1: #{tile.9} parent=0
    #allocation0 [shape = 'u8[4096]{0}', space=vmem, size = 0x1000, scoped, tag = 'scoped mem for output reshape']
    %v2 = vld [vmem:[%s0] sm:$0x1]
    %vm3 = vcmask 64512
    %4 = vst.msk [vmem:[#allocation0] sm:$0x1] %vm3, %v2
    %s5 = scalar_lea.vmem %s0, 15
    %v6 = vld [vmem:[%s5] sm:$0x1]
    %7 = vrot.lane.b32.xlu0 %v6, 120
    %v8 = vpop.permute.xlu0 %7
    %vm9 = vcmask 1048512
    %10 = vst.msk [vmem:[#allocation0] sm:$0x1] %vm9, %v8
    %s11 = scalar_lea.vmem %s0, 14
    %v12 = vld [vmem:[%s11] sm:$0x1]
    %13 = vrot.lane.b32.xlu0 %v12, 112
    %v14 = vpop.permute.xlu0 %13
    %vm15 = vcmask 982912
    %16 = vst.msk [vmem:[#allocation0] sm:$0x1] %vm15, %v14
    %s17 = scalar_lea.vmem %s0, 13
    %v18 = vld [vmem:[%s17] sm:$0x1]
    %19 = vrot.lane.b32.xlu0 %v18, 104
    %v20 = vpop.permute.xlu0 %19
    %vm21 = vcmask 917312
    %22 = vst.msk [vmem:[#allocation0] sm:$0x1] %vm21, %v20
    %s23 = scalar_lea.vmem %s0, 12
    %v24 = vld [vmem:[%s23] sm:$0x1]
    %25 = vrot.lane.b32.xlu0 %v24, 96
    %v26 = vpop.permute.xlu0 %25
    %vm27 = vcmask 851712
    %28 = vst.msk [vmem:[#allocation0] sm:$0x1] %vm27, %v26
    %s29 = scalar_lea.vmem %s0, 11
    %v30 = vld [vmem:[%s29] sm:$0x1]
    %31 = vrot.lane.b32.xlu0 %v30, 88
    %v32 = vpop.permute.xlu0 %31
    %vm33 = vcmask 786112
    %34 = vst.msk [vmem:[#allocation0] sm:$0x1] %vm33, %v32
    %s35 = scalar_lea.vmem %s0, 10
    %v36 = vld [vmem:[%s35] sm:$0x1]
    %37 = vrot.lane.b32.xlu0 %v36, 80
    %v38 = vpop.permute.xlu0 %37
    %vm39 = vcmask 720512
    %40 = vst.msk [vmem:[#allocation0] sm:$0x1] %vm39, %v38
    %s41 = scalar_lea.vmem %s0, 9
    %v42 = vld [vmem:[%s41] sm:$0x1]
    %43 = vrot.lane.b32.xlu0 %v42, 72
    %v44 = vpop.permute.xlu0 %43
    %vm45 = vcmask 654912
    %46 = vst.msk [vmem:[#allocation0] sm:$0x1] %vm45, %v44
    %s47 = scalar_lea.vmem %s0, 8
    %v48 = vld [vmem:[%s47] sm:$0x1]
    %49 = vrot.lane.b32.xlu0 %v48, 64
    %v50 = vpop.permute.xlu0 %49
    %vm51 = vcmask 589312
    %52 = vst.msk [vmem:[#allocation0] sm:$0x1] %vm51, %v50
    %s53 = scalar_lea.vmem %s0, 7
    %v54 = vld [vmem:[%s53] sm:$0x1]
    %55 = vrot.lane.b32.xlu0 %v54, 56
    %v56 = vpop.permute.xlu0 %55
    %vm57 = vcmask 523712
    %58 = vst.msk [vmem:[#allocation0] sm:$0x1] %vm57, %v56
    %s59 = scalar_lea.vmem %s0, 6
    %v60 = vld [vmem:[%s59] sm:$0x1]
    %61 = vrot.lane.b32.xlu0 %v60, 48
    %v62 = vpop.permute.xlu0 %61
    %vm63 = vcmask 458112
    %64 = vst.msk [vmem:[#allocation0] sm:$0x1] %vm63, %v62
    %s65 = scalar_lea.vmem %s0, 5
    %v66 = vld [vmem:[%s65] sm:$0x1]
    %67 = vrot.lane.b32.xlu0 %v66, 40
    %v68 = vpop.permute.xlu0 %67
    %vm69 = vcmask 392512
    %70 = vst.msk [vmem:[#allocation0] sm:$0x1] %vm69, %v68
    %s71 = scalar_lea.vmem %s0, 4
    %v72 = vld [vmem:[%s71] sm:$0x1]
    %73 = vrot.lane.b32.xlu0 %v72, 32
    %v74 = vpop.permute.xlu0 %73
    %vm75 = vcmask 326912
    %76 = vst.msk [vmem:[#allocation0] sm:$0x1] %vm75, %v74
    %s77 = scalar_lea.vmem %s0, 3
    %v78 = vld [vmem:[%s77] sm:$0x1]
    %79 = vrot.lane.b32.xlu0 %v78, 24
    %v80 = vpop.permute.xlu0 %79
    %vm81 = vcmask 261312
    %82 = vst.msk [vmem:[#allocation0] sm:$0x1] %vm81, %v80
    %s83 = scalar_lea.vmem %s0, 2
    %v84 = vld [vmem:[%s83] sm:$0x1]
    %85 = vrot.lane.b32.xlu0 %v84, 16
    %v86 = vpop.permute.xlu0 %85
    %vm87 = vcmask 195712
    %88 = vst.msk [vmem:[#allocation0] sm:$0x1] %vm87, %v86
    %s89 = scalar_lea.vmem %s0, 1
    %v90 = vld [vmem:[%s89] sm:$0x1]
    %91 = vrot.lane.b32.xlu0 %v90, 8
    %v92 = vpop.permute.xlu0 %91
    %vm93 = vcmask 130112
    %94 = vst.msk [vmem:[#allocation0] sm:$0x1] %vm93, %v92
    %s96 = sshllo.u32 0, 1
    %v98 = vld [vmem:[#allocation0] sm:%s96]
    %s99 = sshllo.u32 0, 1
    %100 = vst [vmem:[%s1] sm:%s99] %v98

// kernel: center_block.1
$region0: #{center_block.1}
  #allocation0 [shape = 'u32[]', space=smem, size = 0x4, offset = 0x4, fixed_abs, tag = 'smem constant byte address 0x4 - core index']
  #allocation1 [shape = 'u32[144,128]{1,0:T(1,128)}', space=vmem, size = 0x12000, scoped, tag = 'internal scratch']
  #allocation2 [shape = 'bf16[32,192]{1,0:T(16,128)(2,1)}', space=vmem, size = 0x4000, scoped, tag = 'scratch operand']
  %s0 = inlined_call_operand.vmem [shape: bf16[32,64], index: 0, kind: input, shape index: {}]
  %s1 = inlined_call_operand.vmem [shape: bf16[192,128], index: 1, kind: input, shape index: {}]
  %s2 = inlined_call_operand.vmem [shape: f32[1,128], index: 2, kind: input, shape index: {}]
  %s3 = inlined_call_operand.vmem [shape: bf16[32,128], index: 3, kind: output, shape index: {}]
  %s4 = sld [smem:[#allocation0]]
  $region22: #{center_block.1} parent=0
    _
  %s6 = ssub.s32 1, %s4
  %s7 = scalar_select 0, %s6, %s4
  // Predicated region
  $region2: #{center_block.1} parent=0 // pred_check
    _
  $region3: #{center_block.1} parent=0 // pred_check_branch
    %9 = sbr.rel (0) target = $region5
  $region4: #{center_block.1} parent=0 // pred_region
    _
  $region5: #{center_block.1} parent=0 // pred_fallthru
    _
  // Predicated region
  $region6: #{center_block.1} parent=0 // pred_check
    _
  $region7: #{center_block.1} parent=0 // pred_check_branch
    %11 = sbr.rel (0) target = $region9
  $region8: #{center_block.1} parent=0 // pred_region
    _
  $region9: #{center_block.1} parent=0 // pred_fallthru
    _
  // Predicated region
  $region10: #{center_block.1} parent=0 // pred_check
    _
  $region11: #{center_block.1} parent=0 // pred_check_branch
    %13 = sbr.rel (0) target = $region13
  $region12: #{center_block.1} parent=0 // pred_region
    _
  $region13: #{center_block.1} parent=0 // pred_fallthru
    _
  %v15 = vld [vmem:[%s0] sm:$0xf]
  %v16 = vld [vmem:[%s0 + $0x4] sm:$0xf]
  %v19 = vunpack.c.l.b16 %v15
  %v20 = vunpack.c.l.b16 %v16
  %v21 = vpack.c.b16 %v20, %v19
  %22 = vrot.lane.b32.xlu0 %v21, 64
  %v23 = vpop.permute.xlu0 %22
  %vm25 = vcmask 1048064
  %26 = vst.msk [vmem:[#allocation2] sm:$0xff] %vm25, %v23
  %vm27 = vcmask 516096
  %vm28 = vsmask.f32 256
  %vm29 = vmand %vm27, %vm28
  %v30 = vld [vmem:[#allocation2] sm:$0x1]
  %v31 = vsel %vm29, 0, %v30
  %32 = vst [vmem:[#allocation2] sm:$0x1] %v31
  %v33 = vld [vmem:[%s0] sm:$0xf]
  %v34 = vld [vmem:[%s0 + $0x4] sm:$0xf]
  %v37 = vunpack.c.l.b16 %v33
  %v38 = vunpack.c.l.b16 %v34
  %v39 = vpack.c.b16 %v38, %v37
  %v41 = vshrl.u32 %v39, 16
  %v43 = vrot.slane %v41, 7
  %v44 = vshll.u32 %v39, 16
  %v46 = vor.u32 %v43, %v44
  %vm48 = vcmask 523264
  %vm49 = vsmask.f32 7938
  %vm50 = vmand %vm48, %vm49
  %v51 = vld [vmem:[#allocation2] sm:$0xff]
  %v52 = vsel %vm50, %v46, %v51
  %53 = vst [vmem:[#allocation2] sm:$0xff] %v52
  %v54 = vld [vmem:[%s0] sm:$0xf]
  %v55 = vld [vmem:[%s0 + $0x4] sm:$0xf]
  %v58 = vunpack.c.l.b16 %v54
  %v59 = vunpack.c.l.b16 %v55
  %v60 = vpack.c.b16 %v59, %v58
  %v62 = vshrl.u32 %v60, 16
  %v64 = vshll.u32 %v60, 16
  %v66 = vrot.slane %v64, 1
  %v67 = vor.u32 %v62, %v66
  %vm69 = vsmask.f32 7424
  %vm70 = vmand %vm48, %vm69
  %v71 = vld [vmem:[#allocation2 + $0x8] sm:$0xff]
  %v72 = vsel %vm70, %v67, %v71
  %73 = vst [vmem:[#allocation2 + $0x8] sm:$0xff] %v72
  %vm74 = vcmask 523271
  %vm75 = vsmask.f32 7966
  %vm76 = vmand %vm74, %vm75
  %v77 = vld [vmem:[#allocation2 + $0x8] sm:$0x80]
  %v78 = vsel %vm76, 0, %v77
  %79 = vst [vmem:[#allocation2 + $0x8] sm:$0x80] %v78
  %v80 = vld [vmem:[%s0 + $0x8] sm:$0xf]
  %v81 = vld [vmem:[%s0 + $0xc] sm:$0xf]
  %v84 = vunpack.c.l.b16 %v80
  %v85 = vunpack.c.l.b16 %v81
  %v86 = vpack.c.b16 %v85, %v84
  %87 = vrot.lane.b32.xlu0 %v86, 64
  %v88 = vpop.permute.xlu0 %87
  %90 = vst.msk [vmem:[#allocation2 + $0x10] sm:$0xff] %vm25, %v88
  %v91 = vld [vmem:[#allocation2 + $0x10] sm:$0x1]
  %v92 = vsel %vm29, 0, %v91
  %93 = vst [vmem:[#allocation2 + $0x10] sm:$0x1] %v92
  %v94 = vld [vmem:[%s0 + $0x8] sm:$0xf]
  %v95 = vld [vmem:[%s0 + $0xc] sm:$0xf]
  %v98 = vunpack.c.l.b16 %v94
  %v99 = vunpack.c.l.b16 %v95
  %v100 = vpack.c.b16 %v99, %v98
  %v102 = vshrl.u32 %v100, 16
  %v104 = vrot.slane %v102, 7
  %v105 = vshll.u32 %v100, 16
  %v107 = vor.u32 %v104, %v105
  %v109 = vld [vmem:[#allocation2 + $0x10] sm:$0xff]
  %v110 = vsel %vm50, %v107, %v109
  %111 = vst [vmem:[#allocation2 + $0x10] sm:$0xff] %v110
  %v112 = vld [vmem:[%s0 + $0x8] sm:$0xf]
  %v113 = vld [vmem:[%s0 + $0xc] sm:$0xf]
  %v116 = vunpack.c.l.b16 %v112
  %v117 = vunpack.c.l.b16 %v113
  %v118 = vpack.c.b16 %v117, %v116
  %v120 = vshrl.u32 %v118, 16
  %v122 = vshll.u32 %v118, 16
  %v124 = vrot.slane %v122, 1
  %v125 = vor.u32 %v120, %v124
  %v127 = vld [vmem:[#allocation2 + $0x18] sm:$0xff]
  %v128 = vsel %vm70, %v125, %v127
  %129 = vst [vmem:[#allocation2 + $0x18] sm:$0xff] %v128
  %v130 = vld [vmem:[#allocation2 + $0x18] sm:$0x80]
  %v131 = vsel %vm76, 0, %v130
  %132 = vst [vmem:[#allocation2 + $0x18] sm:$0x80] %v131
  %v133 = vld [vmem:[#allocation2] sm:$0xff]
  %v134 = vld [vmem:[#allocation2 + $0x8] sm:$0xff]
  %v135 = vld [vmem:[#allocation2 + $0x10] sm:$0xff]
  %v136 = vld [vmem:[#allocation2 + $0x18] sm:$0xff]
  %v137 = vld [vmem:[%s1] sm:$0xf]
  %v138 = vld [vmem:[%s1 + $0x4] sm:$0xf]
  %v139 = vld [vmem:[%s1 + $0x8] sm:$0xf]
  %v140 = vld [vmem:[%s1 + $0xc] sm:$0xf]
  %v141 = vld [vmem:[%s1 + $0x10] sm:$0xf]
  %v142 = vld [vmem:[%s1 + $0x14] sm:$0xf]
  %v143 = vld [vmem:[%s1 + $0x18] sm:$0xf]
  %v144 = vld [vmem:[%s1 + $0x1c] sm:$0xf]
  %v145 = vld [vmem:[%s1 + $0x20] sm:$0xf]
  %v146 = vld [vmem:[%s1 + $0x24] sm:$0xf]
  %v147 = vld [vmem:[%s1 + $0x28] sm:$0xf]
  %v148 = vld [vmem:[%s1 + $0x2c] sm:$0xf]
  %v149 = vld [vmem:[%s1 + $0x30] sm:$0xf]
  %v150 = vld [vmem:[%s1 + $0x34] sm:$0xf]
  %v151 = vld [vmem:[%s1 + $0x38] sm:$0xf]
  %v152 = vld [vmem:[%s1 + $0x3c] sm:$0xf]
  %v153 = vld [vmem:[%s1 + $0x40] sm:$0xf]
  %v154 = vld [vmem:[%s1 + $0x44] sm:$0xf]
  %v155 = vld [vmem:[%s1 + $0x48] sm:$0xf]
  %v156 = vld [vmem:[%s1 + $0x4c] sm:$0xf]
  %v157 = vld [vmem:[%s1 + $0x50] sm:$0xf]
  %v158 = vld [vmem:[%s1 + $0x54] sm:$0xf]
  %v159 = vld [vmem:[%s1 + $0x58] sm:$0xf]
  %v160 = vld [vmem:[%s1 + $0x5c] sm:$0xf]
  %v161 = vld [vmem:[%s2] sm:$0x1]
  %v163 = vlaneseq
  %v164 = vshrl.u32 %v163, 7
  %v165 = vsub.s32 0, %v164
  %v166 = vrot.slane %v161, %v165
  %v192 = vunpack.c.l.b16 %v137
  %v193 = vunpack.c.l.b16 %v138
  %v194 = vunpack.c.l.b16 %v139
  %v195 = vunpack.c.l.b16 %v140
  %v196 = vunpack.c.l.b16 %v141
  %v197 = vunpack.c.l.b16 %v142
  %v198 = vunpack.c.l.b16 %v143
  %v199 = vunpack.c.l.b16 %v144
  %v200 = vunpack.c.l.b16 %v145
  %v201 = vunpack.c.l.b16 %v146
  %v202 = vunpack.c.l.b16 %v147
  %v203 = vunpack.c.l.b16 %v148
  %v204 = vunpack.c.l.b16 %v149
  %v205 = vunpack.c.l.b16 %v150
  %v206 = vunpack.c.l.b16 %v151
  %v207 = vunpack.c.l.b16 %v152
  %v208 = vunpack.c.l.b16 %v153
  %v209 = vunpack.c.l.b16 %v154
  %v210 = vunpack.c.l.b16 %v155
  %v211 = vunpack.c.l.b16 %v156
  %v212 = vunpack.c.l.b16 %v157
  %v213 = vunpack.c.l.b16 %v158
  %v214 = vunpack.c.l.b16 %v159
  %v215 = vunpack.c.l.b16 %v160
  %v216 = vpack.c.b16 %v193, %v192
  %v217 = vpack.c.b16 %v195, %v194
  %v218 = vpack.c.b16 %v197, %v196
  %v219 = vpack.c.b16 %v199, %v198
  %v220 = vpack.c.b16 %v201, %v200
  %v221 = vpack.c.b16 %v203, %v202
  %v222 = vpack.c.b16 %v205, %v204
  %v223 = vpack.c.b16 %v207, %v206
  %v224 = vpack.c.b16 %v209, %v208
  %v225 = vpack.c.b16 %v211, %v210
  %v226 = vpack.c.b16 %v213, %v212
  %v227 = vpack.c.b16 %v215, %v214
  %vm240 = vcmask 523264
  %v242 = vsel %vm240, %v134, 0
  %v245 = vsel %vm240, %v136, 0
  %247 = vmatprep.subr.bf16.mxu0 0
  %248 = vmatpush1.bf16.msra.mxu0 %v216
  %249 = vmatprep.subr.bf16.mxu0 0
  %250 = vmatpush1.bf16.msra.mxu0 %v217
  %251 = vmatprep.subr.bf16.mxu0 0
  %252 = vmatpush1.bf16.msra.mxu0 %v218
  %253 = vmatprep.subr.bf16.mxu0 0
  %254 = vmatpush1.bf16.msra.mxu0 %v219
  %255 = vmatprep.subr.bf16.mxu0 0
  %256 = vmatpush1.bf16.msra.mxu0 %v220
  %257 = vmatprep.subr.bf16.mxu0 0
  %258 = vmatpush1.bf16.msra.mxu0 %v221
  %259 = vmatprep.subr.bf16.mxu0 0
  %260 = vmatpush1.bf16.msra.mxu0 %v222
  %261 = vmatprep.subr.bf16.mxu0 0
  %262 = vmatpush1.bf16.msra.mxu0 %v223
  %263 = vmatprep.subr.bf16.mxu0 0
  %264 = vmatpush1.bf16.msra.mxu0 %v224
  %265 = vmatprep.subr.bf16.mxu0 0
  %266 = vmatpush1.bf16.msra.mxu0 %v225
  %267 = vmatprep.subr.bf16.mxu0 0
  %268 = vmatpush1.bf16.msra.mxu0 %v226
  %269 = vmatprep.subr.bf16.mxu0 0
  %270 = vmatpush1.bf16.msra.mxu0 %v227
  %271 = vmatprep.subr.bf16.mxu0 0
  %272 = vmatpush1.bf16.msra.mxu0 0
  %273 = vmatprep.subr.bf16.mxu0 0
  %274 = vmatpush1.bf16.msra.mxu0 0
  %275 = vmatprep.subr.bf16.mxu0 0
  %276 = vmatpush1.bf16.msra.mxu0 0
  %277 = vmatprep.subr.bf16.mxu0 0
  %278 = vmatpush1.bf16.msra.mxu0 0
  %279 = vmatprep.mubr.bf16.mxu0 %v242
  %280 = vmatmul.mubr.bf16.gmra.mrb[0].mxu0 %v133
  %v281 = vpop.f32.mrb[0].mxu0
  %v282 = vadd.f32 %v166, %v281
  %v283 = vpop.f32.mrb[0].mxu0
  %v284 = vpop.f32.mrb[0].mxu0
  %v285 = vadd.f32 %v166, %v284
  %v286 = vpop.f32.mrb[0].mxu0
  %287 = vmatprep.mubr.bf16.mxu0 %v245
  %288 = vmatmul.mubr.bf16.gmra.mrb[0].mxu0 %v135
  %v289 = vpop.f32.mrb[0].mxu0
  %v290 = vadd.f32 %v166, %v289
  %v291 = vpop.f32.mrb[0].mxu0
  %v292 = vpop.f32.mrb[0].mxu0
  %v293 = vadd.f32 %v166, %v292
  %v294 = vpop.f32.mrb[0].mxu0
  %295 = vdwg.mxu0
  %v296 = vpack.c.bf16 %v285, %v282
  %v297 = vpack.c.bf16 %v293, %v290
  %v300 = vunpack.c.l.b16 %v296
  %v301 = vunpack.c.h.b16 %v296
  %v302 = vunpack.c.l.b16 %v297
  %v303 = vunpack.c.h.b16 %v297
  %v304 = vpack.c.b16 %v300, %v300
  %v305 = vpack.c.b16 %v301, %v301
  %v306 = vpack.c.b16 %v302, %v302
  %v307 = vpack.c.b16 %v303, %v303
  %312 = vst [vmem:[%s3] sm:$0xf] %v304
  %313 = vst [vmem:[%s3 + $0x4] sm:$0xf] %v305
  %314 = vst [vmem:[%s3 + $0x8] sm:$0xf] %v306
  %315 = vst [vmem:[%s3 + $0xc] sm:$0xf] %v307
  // Predicated region
  $region14: #{center_block.1} parent=0 // pred_check
    _
  $region15: #{center_block.1} parent=0 // pred_check_branch
    %317 = sbr.rel (0) target = $region17
  $region16: #{center_block.1} parent=0 // pred_region
    _
  $region17: #{center_block.1} parent=0 // pred_fallthru
    _
  // Predicated region
  $region18: #{center_block.1} parent=0 // pred_check
    _
  $region19: #{center_block.1} parent=0 // pred_check_branch
    %319 = sbr.rel (0) target = $region21
  $region20: #{center_block.1} parent=0 // pred_region
    _
  $region21: #{center_block.1} parent=0 // pred_fallthru
    _

</llo_original>
